<compile_context>
chip_gen: v5e
topology: v5e:2x2
jax: 0.10.0
libtpu: 0.0.40
codegen_flags: <defaults>
</compile_context>

<pallas_src>
import functools
import math

import jax
import jax.numpy as jnp
from jax.experimental import pallas as pl
from jax.experimental.pallas import tpu as pltpu


def _round_up(x, m):
    return ((x + m - 1) // m) * m


# ------------------------- single-pass fused kernel ------------------------- #

def _vn_maxpool_fused_kernel(x_ref, w_ref, o_ref, *, n_valid, n_pad, mxu_dtype):
    # x_ref: (1, F, 3*n_pad)  one batch; lanes laid out [c0 | c1 | c2], each
    #        n_pad wide (128-aligned), so component slices are aligned & free.
    # w_ref: (F, F)           feature-mixing weight (resident across the grid)
    # o_ref: (1, F, 3)        pooled output, written once per batch
    f_dim = w_ref.shape[0]
    x_all = x_ref[0]                                        # (F, 3*n_pad)

    w = w_ref[...]
    w_mm = w if w.dtype == mxu_dtype else w.astype(mxu_dtype)
    x_mm = x_all if x_all.dtype == mxu_dtype else x_all.astype(mxu_dtype)
    # One long MXU stream over all 3 components at once:
    #   d[f, c*n_pad + n] = sum_g W[f, g] * x[g, c*n_pad + n]
    d_all = jnp.dot(w_mm, x_mm, preferred_element_type=jnp.float32)

    x0 = x_all[:, 0 * n_pad:1 * n_pad].astype(jnp.float32)
    x1 = x_all[:, 1 * n_pad:2 * n_pad].astype(jnp.float32)
    x2 = x_all[:, 2 * n_pad:3 * n_pad].astype(jnp.float32)
    d0 = d_all[:, 0 * n_pad:1 * n_pad]
    d1 = d_all[:, 1 * n_pad:2 * n_pad]
    d2 = d_all[:, 2 * n_pad:3 * n_pad]

    dot = x0 * d0 + x1 * d1 + x2 * d2                        # (F, n_pad) f32

    lane = jax.lax.broadcasted_iota(jnp.int32, dot.shape, 1)  # reused below
    if n_pad != n_valid:
        dot = jnp.where(lane < n_valid, dot, -jnp.inf)        # mask padding

    m = jnp.max(dot, axis=-1, keepdims=True)                  # (F, 1)
    first = jnp.min(jnp.where(dot == m, lane, n_pad),
                    axis=-1, keepdims=True)                   # first max index
    onehot = lane == first                                    # (F, n_pad) bool

    c0 = jnp.sum(jnp.where(onehot, x0, 0.0), axis=-1, keepdims=True)
    c1 = jnp.sum(jnp.where(onehot, x1, 0.0), axis=-1, keepdims=True)
    c2 = jnp.sum(jnp.where(onehot, x2, 0.0), axis=-1, keepdims=True)

    col = jax.lax.broadcasted_iota(jnp.int32, (f_dim, 3), 1)
    o_ref[0] = jnp.where(col == 0, c0,
                         jnp.where(col == 1, c1, c2)).astype(o_ref.dtype)


# ------------------------ tiled fallback (large N) -------------------------- #

def _vn_maxpool_tiled_kernel(x0_ref, x1_ref, x2_ref, w_ref, o_ref,
                             best_ref, win_ref, *,
                             n_valid, tile_n, mask_padding, mxu_dtype):
    # x{c}_ref: (1, F, tile_n) lane-dense component tiles (same HBM array,
    #           lane-offset by component via the index_map -> no transpose).
    # best_ref: (F, 1) VMEM running max of dot; win_ref: (F, 3) running winner.
    f_dim = w_ref.shape[0]
    n_idx = pl.program_id(1)

    @pl.when(n_idx == 0)
    def _init():
        best_ref[...] = jnp.full(best_ref.shape, -jnp.inf, best_ref.dtype)
        win_ref[...] = jnp.zeros(win_ref.shape, win_ref.dtype)

    w = w_ref[...]
    w_mm = w if w.dtype == mxu_dtype else w.astype(mxu_dtype)

    x0 = x0_ref[0].astype(jnp.float32)
    x1 = x1_ref[0].astype(jnp.float32)
    x2 = x2_ref[0].astype(jnp.float32)

    def mix(xc_ref):
        xc = xc_ref[0]
        xc_mm = xc if xc.dtype == mxu_dtype else xc.astype(mxu_dtype)
        return jnp.dot(w_mm, xc_mm, preferred_element_type=jnp.float32)

    d0 = mix(x0_ref)
    d1 = mix(x1_ref)
    d2 = mix(x2_ref)
    dot = x0 * d0 + x1 * d1 + x2 * d2                         # (F, tile_n) f32

    lane = jax.lax.broadcasted_iota(jnp.int32, dot.shape, 1)
    if mask_padding:
        glob = n_idx * tile_n + lane
        dot = jnp.where(glob < n_valid, dot, -jnp.inf)

    m = jnp.max(dot, axis=-1, keepdims=True)
    first = jnp.min(jnp.where(dot == m, lane, tile_n), axis=-1, keepdims=True)
    onehot = lane == first

    c0 = jnp.sum(jnp.where(onehot, x0, 0.0), axis=-1, keepdims=True)
    c1 = jnp.sum(jnp.where(onehot, x1, 0.0), axis=-1, keepdims=True)
    c2 = jnp.sum(jnp.where(onehot, x2, 0.0), axis=-1, keepdims=True)

    col = jax.lax.broadcasted_iota(jnp.int32, (f_dim, 3), 1)
    cand = jnp.where(col == 0, c0, jnp.where(col == 1, c1, c2))

    # Strict '>' keeps the earliest tile on ties -> global first-max index.
    better = m > best_ref[...]
    best_ref[...] = jnp.where(better, m, best_ref[...])
    win_ref[...] = jnp.where(better, cand, win_ref[...])

    # Deferred output write: the narrow (F,3) store happens once per batch.
    @pl.when(n_idx == pl.num_programs(1) - 1)
    def _finalize():
        o_ref[0] = win_ref[...].astype(o_ref.dtype)


# --------------------------------- wrapper ---------------------------------- #

def vn_max_pool(x, weight, *, mxu_dtype=None, tile_n=None,
                vmem_budget_bytes=40 * 1024 * 1024):
    """VNMaxPool forward.

    x:      (B, F, 3, N) vector point features.
    weight: (F, F), the weight of nn.Linear(F, F, bias=False).
    mxu_dtype: optional dtype (e.g. jnp.bfloat16) for the MXU matmul inputs;
               elementwise dot-product / argmax math always stays in float32.
    Returns (B, F, 3).
    """
    B, F, C, N = x.shape
    assert C == 3, "VNMaxPool expects 3-D vector features"
    assert weight.shape == (F, F)
    mxu_dtype = jnp.dtype(x.dtype) if mxu_dtype is None else jnp.dtype(mxu_dtype)
    isz = jnp.dtype(x.dtype).itemsize

    def est_bytes(lanes_per_comp):
        # double-buffered x block (3 components) + f32 d + f32 temporaries + W
        return (2 * 3 * F * lanes_per_comp * isz
                + 3 * F * lanes_per_comp * 4
                + 3 * F * lanes_per_comp * 4
                + F * F * 4)

    np_single = max(128, _round_up(N, 128))
    use_single = tile_n is None and est_bytes(np_single) <= vmem_budget_bytes

    if use_single:
        n_pad = np_single
        est = est_bytes(n_pad)
    else:
        if tile_n is None:
            if est_bytes(128) > vmem_budget_bytes:
                # TODO(synk): add an F-tiled variant for extremely large F.
                raise ValueError("in_channels too large for one VMEM feature block")
            tn = 128
            while tn < 2048 and est_bytes(tn * 2) <= vmem_budget_bytes:
                tn *= 2
        else:
            tn = int(tile_n)
            assert tn >= 128 and tn % 128 == 0, "tile_n must be a multiple of 128"
        n_pad = _round_up(N, tn)
        num_tiles = n_pad // tn
        est = est_bytes(tn)

    vmem_limit = int(min(48 * 1024 * 1024,
                         max(32 * 1024 * 1024, est + (4 << 20))))

    # Pad the sample axis (zeros; masked to -inf in-kernel) and take the free
    # contiguous reshape (B, F, 3, Npad) -> (B, F, 3*Npad). No transpose.
    if n_pad != N:
        x = jnp.pad(x, ((0, 0), (0, 0), (0, 0), (0, n_pad - N)))
    x_flat = jnp.reshape(x, (B, F, 3 * n_pad))

    out_shape = jax.ShapeDtypeStruct((B, F, 3), x.dtype)

    if use_single:
        kernel = functools.partial(_vn_maxpool_fused_kernel,
                                   n_valid=N, n_pad=n_pad, mxu_dtype=mxu_dtype)
        return pl.pallas_call(
            kernel,
            out_shape=out_shape,
            grid=(B,),
            in_specs=[
                pl.BlockSpec((1, F, 3 * n_pad), lambda b: (b, 0, 0)),
                pl.BlockSpec((F, F), lambda b: (0, 0)),
            ],
            out_specs=pl.BlockSpec((1, F, 3), lambda b: (b, 0, 0)),
            compiler_params=pltpu.CompilerParams(
                dimension_semantics=("parallel",),
                vmem_limit_bytes=vmem_limit),
        )(x_flat, weight)

    kernel = functools.partial(_vn_maxpool_tiled_kernel,
                               n_valid=N, tile_n=tn,
                               mask_padding=(n_pad != N), mxu_dtype=mxu_dtype)
    return pl.pallas_call(
        kernel,
        out_shape=out_shape,
        grid=(B, num_tiles),
        in_specs=[
            # Same HBM array three times; block index = component*num_tiles + n
            # -> lane offset component*Npad + n*tile_n (aligned, lane-dense).
            pl.BlockSpec((1, F, tn), lambda b, n: (b, 0, 0 * num_tiles + n)),
            pl.BlockSpec((1, F, tn), lambda b, n: (b, 0, 1 * num_tiles + n)),
            pl.BlockSpec((1, F, tn), lambda b, n: (b, 0, 2 * num_tiles + n)),
            pl.BlockSpec((F, F), lambda b, n: (0, 0)),
        ],
        out_specs=pl.BlockSpec((1, F, 3), lambda b, n: (b, 0, 0)),
        scratch_shapes=[pltpu.VMEM((F, 1), jnp.float32),   # running max dot
                        pltpu.VMEM((F, 3), jnp.float32)],  # running winner vec
        compiler_params=pltpu.CompilerParams(
            dimension_semantics=("parallel", "arbitrary"),
            vmem_limit_bytes=vmem_limit),
    )(x_flat, x_flat, x_flat, weight)


# -------------------------- pure-JAX reference check ------------------------ #

def vn_max_pool_ref(x, weight):
    d = jnp.einsum('fg,bgcn->bfcn', weight, x)
    dot = jnp.sum(x * d, axis=2)                       # (B, F, N)
    idx = jnp.argmax(dot, axis=-1)                     # (B, F)
    return jnp.take_along_axis(x, idx[:, :, None, None], axis=-1)[..., 0]


def _check(out, x, weight, tol=1e-3):
    ref = vn_max_pool_ref(x, weight)
    if bool(jnp.allclose(out, ref, atol=1e-5, rtol=1e-5)):
        return
    # Tolerate floating-point ties in the argmax: the returned vector must be
    # one of the input samples and its dot-product must be within tol of max.
    d = jnp.einsum('fg,bgcn->bfcn', weight, x)
    dot = jnp.sum(x * d, axis=2)                        # (B, F, N)
    m = jnp.max(dot, axis=-1)                           # (B, F)
    eq = jnp.all(out[:, :, :, None] == x, axis=2)       # (B, F, N)
    assert bool(jnp.all(jnp.any(eq, axis=-1))), "output is not an input sample"
    sel = jnp.max(jnp.where(eq, dot, -jnp.inf), axis=-1)
    slack = tol * jnp.maximum(1.0, jnp.abs(m))
    assert bool(jnp.all(sel >= m - slack)), "selected sample is not a maximizer"


# ----------------------------------- main ----------------------------------- #

if __name__ == "__main__":
    key = jax.random.PRNGKey(0)
    kx1, kx2, kw = jax.random.split(key, 3)

    B, F, N = 2, 32, 16                          # in_channels=32, 16 samples
    w = jax.random.normal(kw, (F, F), jnp.float32) / math.sqrt(F)
    x1 = jax.random.normal(kx1, (B, F, 3, N), jnp.float32)

    fwd = jax.jit(vn_max_pool,
                  static_argnames=("mxu_dtype", "tile_n", "vmem_budget_bytes"))

    # 1) Primary single-pass path (whole padded sample axis per batch step).
    out1 = jax.block_until_ready(fwd(x1, w))
    assert out1.shape == (B, F, 3), out1.shape
    assert out1.dtype == jnp.float32
    assert bool(jnp.all(jnp.isfinite(out1)))
    _check(out1, x1, w)

    # 2) Tiled fallback path: N=300 pads to 384 -> three 128-sample tiles,
    #    padded-lane masking, running max + deferred output write.
    N2 = 300
    x2 = jax.random.normal(kx2, (B, F, 3, N2), jnp.float32)
    out2 = jax.block_until_ready(fwd(x2, w, tile_n=128))
    assert out2.shape == (B, F, 3), out2.shape
    _check(out2, x2, w)

    # 3) bf16-MXU variant (v6e/v7x fast path); elementwise/argmax stay f32.
    out3 = jax.block_until_ready(fwd(x1, w, mxu_dtype=jnp.bfloat16))
    assert out3.shape == (B, F, 3), out3.shape
    assert bool(jnp.all(jnp.isfinite(out3)))
    _check(out3, x1, w, tol=0.05)

    print("KERNEL_OK")
</pallas_src>

<mosaic_0001>
module attributes {stable_mosaic.version = 11 : i64} {
  func.func @_vn_maxpool_fused_kernel(%arg0: i32, %arg1: memref<1x32x384xf32, #tpu.memory_space<vmem>>, %arg2: memref<32x32xf32, #tpu.memory_space<vmem>>, %arg3: memref<1x32x3xf32, #tpu.memory_space<vmem>>) attributes {dimension_semantics = [#tpu.dimension_semantics<parallel>], iteration_bounds = array<i64: 2>, scalar_prefetch = 0 : i64, scratch_operands = 0 : i64, tpu.core_type = #tpu.core_type<tc>, window_params = [{transform_indices = @transform_0, window_bounds = array<i64: 1, 32, 384>}, {pipeline_mode = #tpu.pipeline_mode<synchronous>, transform_indices = @transform_1, window_bounds = array<i64: 32, 32>}, {transform_indices = @transform_2, window_bounds = array<i64: 1, 32, 3>}]} {
    %c0 = arith.constant 0 : index
    %c0_0 = arith.constant 0 : index
    %c0_1 = arith.constant 0 : index
    %0 = vector.load %arg1[%c0, %c0_0, %c0_1] : memref<1x32x384xf32, #tpu.memory_space<vmem>>, vector<1x32x384xf32>
    %1 = vector.shape_cast %0 : vector<1x32x384xf32> to vector<32x384xf32>
    %c0_2 = arith.constant 0 : index
    %c0_3 = arith.constant 0 : index
    %2 = vector.load %arg2[%c0_2, %c0_3] : memref<32x32xf32, #tpu.memory_space<vmem>>, vector<32x32xf32>
    %cst = arith.constant dense<0.000000e+00> : vector<32x384xf32>
    %3 = tpu.matmul %2, %1, %cst {dimension_numbers = #tpu.dot_dimension_numbers<[1], [0], [0], [1], [0, 0, 1, 1], [], []>} : vector<32x32xf32>, vector<32x384xf32>, vector<32x384xf32> -> vector<32x384xf32>
    %4 = vector.extract_strided_slice %1 {offsets = [0, 0], sizes = [32, 128], strides = [1, 1]} : vector<32x384xf32> to vector<32x128xf32>
    %5 = vector.extract_strided_slice %1 {offsets = [0, 128], sizes = [32, 128], strides = [1, 1]} : vector<32x384xf32> to vector<32x128xf32>
    %6 = vector.extract_strided_slice %1 {offsets = [0, 256], sizes = [32, 128], strides = [1, 1]} : vector<32x384xf32> to vector<32x128xf32>
    %7 = vector.extract_strided_slice %3 {offsets = [0, 0], sizes = [32, 128], strides = [1, 1]} : vector<32x384xf32> to vector<32x128xf32>
    %8 = vector.extract_strided_slice %3 {offsets = [0, 128], sizes = [32, 128], strides = [1, 1]} : vector<32x384xf32> to vector<32x128xf32>
    %9 = vector.extract_strided_slice %3 {offsets = [0, 256], sizes = [32, 128], strides = [1, 1]} : vector<32x384xf32> to vector<32x128xf32>
    %10 = arith.mulf %4, %7 : vector<32x128xf32>
    %11 = arith.mulf %5, %8 : vector<32x128xf32>
    %12 = arith.addf %10, %11 : vector<32x128xf32>
    %13 = arith.mulf %6, %9 : vector<32x128xf32>
    %14 = arith.addf %12, %13 : vector<32x128xf32>
    %15 = tpu.iota {dimensions = array<i32: 1>} : vector<32x128xi32>
    %c16_i32 = arith.constant 16 : i32
    %16 = vector.broadcast %c16_i32 : i32 to vector<32x128xi32>
    %17 = arith.cmpi slt, %15, %16 : vector<32x128xi32>
    %cst_4 = arith.constant 0xFF800000 : f32
    %18 = vector.broadcast %cst_4 : f32 to vector<32x128xf32>
    %19 = arith.select %17, %14, %18 : vector<32x128xi1>, vector<32x128xf32>
    %cst_5 = arith.constant dense<0xFF800000> : vector<32xf32>
    %20 = vector.multi_reduction <maximumf>, %19, %cst_5 [1] : vector<32x128xf32> to vector<32xf32>
    %21 = vector.shape_cast %20 : vector<32xf32> to vector<32x1xf32>
    %22 = vector.broadcast %21 : vector<32x1xf32> to vector<32x128xf32>
    %23 = arith.cmpf oeq, %19, %22 : vector<32x128xf32>
    %c128_i32 = arith.constant 128 : i32
    %24 = vector.broadcast %c128_i32 : i32 to vector<32x128xi32>
    %25 = arith.select %23, %15, %24 : vector<32x128xi1>, vector<32x128xi32>
    %cst_6 = arith.constant dense<2147483647> : vector<32xi32>
    %26 = vector.multi_reduction <minsi>, %25, %cst_6 [1] : vector<32x128xi32> to vector<32xi32>
    %27 = vector.shape_cast %26 : vector<32xi32> to vector<32x1xi32>
    %28 = vector.broadcast %27 : vector<32x1xi32> to vector<32x128xi32>
    %29 = arith.cmpi eq, %15, %28 : vector<32x128xi32>
    %cst_7 = arith.constant 0.000000e+00 : f32
    %30 = vector.broadcast %cst_7 : f32 to vector<32x128xf32>
    %31 = arith.select %29, %4, %30 : vector<32x128xi1>, vector<32x128xf32>
    %cst_8 = arith.constant dense<0.000000e+00> : vector<32xf32>
    %32 = vector.multi_reduction <add>, %31, %cst_8 [1] : vector<32x128xf32> to vector<32xf32>
    %33 = vector.shape_cast %32 : vector<32xf32> to vector<32x1xf32>
    %cst_9 = arith.constant 0.000000e+00 : f32
    %34 = vector.broadcast %cst_9 : f32 to vector<32x128xf32>
    %35 = arith.select %29, %5, %34 : vector<32x128xi1>, vector<32x128xf32>
    %cst_10 = arith.constant dense<0.000000e+00> : vector<32xf32>
    %36 = vector.multi_reduction <add>, %35, %cst_10 [1] : vector<32x128xf32> to vector<32xf32>
    %37 = vector.shape_cast %36 : vector<32xf32> to vector<32x1xf32>
    %cst_11 = arith.constant 0.000000e+00 : f32
    %38 = vector.broadcast %cst_11 : f32 to vector<32x128xf32>
    %39 = arith.select %29, %6, %38 : vector<32x128xi1>, vector<32x128xf32>
    %cst_12 = arith.constant dense<0.000000e+00> : vector<32xf32>
    %40 = vector.multi_reduction <add>, %39, %cst_12 [1] : vector<32x128xf32> to vector<32xf32>
    %41 = vector.shape_cast %40 : vector<32xf32> to vector<32x1xf32>
    %42 = tpu.iota {dimensions = array<i32: 1>} : vector<32x3xi32>
    %c0_i32 = arith.constant 0 : i32
    %43 = vector.broadcast %c0_i32 : i32 to vector<32x3xi32>
    %44 = arith.cmpi eq, %42, %43 : vector<32x3xi32>
    %c1_i32 = arith.constant 1 : i32
    %45 = vector.broadcast %c1_i32 : i32 to vector<32x3xi32>
    %46 = arith.cmpi eq, %42, %45 : vector<32x3xi32>
    %47 = vector.shape_cast %37 : vector<32x1xf32> to vector<32x1xf32>
    %48 = vector.broadcast %47 : vector<32x1xf32> to vector<32x3xf32>
    %49 = vector.shape_cast %41 : vector<32x1xf32> to vector<32x1xf32>
    %50 = vector.broadcast %49 : vector<32x1xf32> to vector<32x3xf32>
    %51 = arith.select %46, %48, %50 : vector<32x3xi1>, vector<32x3xf32>
    %52 = vector.shape_cast %33 : vector<32x1xf32> to vector<32x1xf32>
    %53 = vector.broadcast %52 : vector<32x1xf32> to vector<32x3xf32>
    %54 = arith.select %44, %53, %51 : vector<32x3xi1>, vector<32x3xf32>
    %c0_13 = arith.constant 0 : index
    %c0_14 = arith.constant 0 : index
    %c0_15 = arith.constant 0 : index
    %55 = vector.load %arg3[%c0_13, %c0_14, %c0_15] : memref<1x32x3xf32, #tpu.memory_space<vmem>>, vector<1x32x3xf32>
    %56 = vector.shape_cast %55 : vector<1x32x3xf32> to vector<32x3xf32>
    %57 = vector.shape_cast %54 : vector<32x3xf32> to vector<1x32x3xf32>
    tpu.vector_store %arg3[%c0_13, %c0_14, %c0_15], %57 {strides = array<i32>} : memref<1x32x3xf32, #tpu.memory_space<vmem>>, vector<1x32x3xf32>,
    return
  }
  func.func @transform_0(%arg0: i32) -> (i32, i32, i32) {
    %c0_i32 = arith.constant 0 : i32
    %c0_i32_0 = arith.constant 0 : i32
    %c0_i32_1 = arith.constant 0 : i32
    return %arg0, %c0_i32, %c0_i32_0 : i32, i32, i32
  }
  func.func @transform_1(%arg0: i32) -> (i32, i32) {
    %c0_i32 = arith.constant 0 : i32
    %c0_i32_0 = arith.constant 0 : i32
    %c0_i32_1 = arith.constant 0 : i32
    return %c0_i32, %c0_i32_0 : i32, i32
  }
  func.func @transform_2(%arg0: i32) -> (i32, i32, i32) {
    %c0_i32 = arith.constant 0 : i32
    %c0_i32_0 = arith.constant 0 : i32
    %c0_i32_1 = arith.constant 0 : i32
    return %arg0, %c0_i32, %c0_i32_0 : i32, i32, i32
  }
}

</mosaic_0001>

<llo_original>
// kernel: vn_max_pool.1
$region0: #{vn_max_pool.1}
  #allocation0 [shape = 'u32[]', space=smem, size = 0x4, offset = 0x4, fixed_abs, tag = 'smem constant byte address 0x4 - core index']
  #allocation1 [shape = 'u32[72,128]{1,0:T(1,128)}', space=vmem, size = 0x9000, scoped, tag = 'internal scratch']
  %s0 = inlined_call_operand.vmem [shape: f32[2,32,384], index: 0, kind: input, shape index: {}]
  %s1 = inlined_call_operand.vmem [shape: f32[32,32], index: 1, kind: input, shape index: {}]
  %s2 = inlined_call_operand.vmem [shape: f32[2,32,3], index: 2, kind: output, shape index: {}]
  %s3 = sld [smem:[#allocation0]]
  $region41: #{vn_max_pool.1} parent=0
    _
  %s5 = ssub.s32 1, %s3
  %s6 = scalar_select 0, %s5, %s3
  loop: start=0, step=1, limit=4
  $region2: #{vn_max_pool.1} parent=0 // loop_pre_header
    _
  $region3: #{vn_max_pool.1} parent=0 // loop_header
    %s8 = sphi 0, %s12
    %p9 = scmp.ge.s32.totalorder %s8, 4
    %s18 = sphi 0, %s20
    %s21 = sphi 0, %s18
    %s22 = sphi 0, %s21
    %s38 = sphi 0, %s22
    %s42 = sphi 0, %s42
    %s44 = sphi 0, %s42
    %s45 = sphi 0, %s44
    %s59 = sphi 0, %s45
    %s65 = sphi 0, %s67
    %s68 = sphi 0, %s65
    %s69 = sphi 0, %s68
    %s85 = sphi 0, %s69
  $region4: #{vn_max_pool.1} parent=0 // loop_header_branch
    %11 = sbr.rel (%p9) target = $region8
  $region5: #{vn_max_pool.1} parent=0 // loop_body
    %s13 = ssub.s32 %s8, 1
    %s14 = ssub.s32 %s8, 2
    %s15 = sadd.s32 %s8, 1
    %s16 = ssub.s32 %s8, %s15
    %p17 = scmp.eq.s32.totalorder %s16, 0
    %s19 = sadd.s32 %s18, 1
    %s20 = scalar_select %p17, %s18, %s19
    %p23 = pneg %p17
    %p24 = scmp.eq.s32.totalorder %s8, 1
    %p25 = por %p23, %p24
    %p26 = scmp.ne.s32.totalorder %s18, %s21
    %p27 = scmp.eq.s32.totalorder %s8, 0
    %p28 = por %p26, %p27
    %p29 = scmp.ne.s32.totalorder %s18, %s21
    %p30 = scmp.eq.s32.totalorder %s13, 1
    %p31 = por %p29, %p30
    %p32 = scmp.ne.s32.totalorder %s21, %s22
    %p33 = scmp.eq.s32.totalorder %s13, 0
    %p34 = por %p32, %p33
    %p35 = scmp.ne.s32.totalorder %s21, %s22
    %p36 = scmp.eq.s32.totalorder %s14, 1
    %p37 = por %p35, %p36
    %p39 = scmp.ne.s32.totalorder %s22, %s38
    %p40 = scmp.eq.s32.totalorder %s14, 0
    %p41 = por %p39, %p40
    %s43 = sadd.s32 %s42, 1
    %p46 = scmp.eq.s32.totalorder %s8, 1
    %p47 = scmp.ne.s32.totalorder %s42, %s44
    %p48 = scmp.eq.s32.totalorder %s8, 0
    %p49 = por %p47, %p48
    %p50 = scmp.ne.s32.totalorder %s42, %s44
    %p51 = scmp.eq.s32.totalorder %s13, 1
    %p52 = por %p50, %p51
    %p53 = scmp.ne.s32.totalorder %s44, %s45
    %p54 = scmp.eq.s32.totalorder %s13, 0
    %p55 = por %p53, %p54
    %p56 = scmp.ne.s32.totalorder %s44, %s45
    %p57 = scmp.eq.s32.totalorder %s14, 1
    %p58 = por %p56, %p57
    %p60 = scmp.ne.s32.totalorder %s45, %s59
    %p61 = scmp.eq.s32.totalorder %s14, 0
    %p62 = por %p60, %p61
    %s63 = ssub.s32 %s8, %s15
    %p64 = scmp.eq.s32.totalorder %s63, 0
    %s66 = sadd.s32 %s65, 1
    %s67 = scalar_select %p64, %s65, %s66
    %p70 = pneg %p64
    %p71 = scmp.eq.s32.totalorder %s8, 1
    %p72 = por %p70, %p71
    %p73 = scmp.ne.s32.totalorder %s65, %s68
    %p74 = scmp.eq.s32.totalorder %s8, 0
    %p75 = por %p73, %p74
    %p76 = scmp.ne.s32.totalorder %s65, %s68
    %p77 = scmp.eq.s32.totalorder %s13, 1
    %p78 = por %p76, %p77
    %p79 = scmp.ne.s32.totalorder %s68, %s69
    %p80 = scmp.eq.s32.totalorder %s13, 0
    %p81 = por %p79, %p80
    %p82 = scmp.ne.s32.totalorder %s68, %s69
    %p83 = scmp.eq.s32.totalorder %s14, 1
    %p84 = por %p82, %p83
    %p86 = scmp.ne.s32.totalorder %s69, %s85
    %p87 = scmp.eq.s32.totalorder %s14, 0
    %p88 = por %p86, %p87
    %p89 = scmp.le.s32.totalorder 1, %s8
    %p90 = scmp.lt.s32.totalorder %s8, 3
    %p91 = pnand %p89, %p90
    %p92 = pneg %p91
    // Predicated region
    $region9: #{vn_max_pool.1} parent=5 // pred_check
      _
    $region10: #{vn_max_pool.1} parent=5 // pred_check_branch
      %94 = sbr.rel (%p91) target = $region12
    $region11: #{vn_max_pool.1} parent=5 // pred_region
      %s95 = ssub.s32 %s8, 1
      // Predicated region
      $region13: #{vn_max_pool.1} parent=11 // pred_check
        %p96 = pneg %p55
      $region14: #{vn_max_pool.1} parent=11 // pred_check_branch
        %98 = sbr.rel (%p96) target = $region16
      $region15: #{vn_max_pool.1} parent=11 // pred_region
        _
      $region16: #{vn_max_pool.1} parent=11 // pred_fallthru
        _
    $region12: #{vn_max_pool.1} parent=5 // pred_fallthru
      _
    %p99 = scmp.lt.s32.totalorder %s8, 2
    // Predicated region
    $region17: #{vn_max_pool.1} parent=5 // pred_check
      %p100 = pneg %p99
    $region18: #{vn_max_pool.1} parent=5 // pred_check_branch
      %102 = sbr.rel (%p100) target = $region20
    $region19: #{vn_max_pool.1} parent=5 // pred_region
      // Predicated region
      $region21: #{vn_max_pool.1} parent=19 // pred_check
        %p103 = pneg %p28
      $region22: #{vn_max_pool.1} parent=19 // pred_check_branch
        %105 = sbr.rel (%p103) target = $region24
      $region23: #{vn_max_pool.1} parent=19 // pred_region
        %p106 = scmp.lt.s32.totalorder %s8, 1
        %s107 = scalar_select %p106, %s8, 1
        %s108 = smul.addr %s107, 12
        %s109 = smul.addr %s108, 8
        %s110 = scalar_lea.vmem %s0, %s109
      $region24: #{vn_max_pool.1} parent=19 // pred_fallthru
        _
    $region20: #{vn_max_pool.1} parent=5 // pred_fallthru
      _
    %p111 = scmp.le.s32.totalorder 1, %s8
    %p112 = scmp.lt.s32.totalorder %s8, 3
    %p113 = pnand %p111, %p112
    %p114 = pneg %p113
    // Predicated region
    $region25: #{vn_max_pool.1} parent=5 // pred_check
      _
    $region26: #{vn_max_pool.1} parent=5 // pred_check_branch
      %116 = sbr.rel (%p113) target = $region28
    $region27: #{vn_max_pool.1} parent=5 // pred_region
      %s117 = ssub.s32 %s8, 1
      %p118 = scmp.lt.s32.totalorder %s13, 1
      %s119 = scalar_select %p118, %s13, 1
      %s120 = smul.addr %s119, 12
      %s121 = smul.addr %s120, 8
      %s122 = scalar_lea.vmem %s0, %s121
      %p123 = pneg %p34
      %p124 = pneg %p31
      %p125 = pneg %p55
      %p126 = pneg %p52
      %p127 = pneg %p81
      %p128 = pneg %p78
      %p129 = scmp.lt.s32.totalorder %s13, 1
      %s130 = scalar_select %p129, %s13, 1
      %s131 = smul.addr %s130, 4
      %s132 = smul.addr %s131, 8
      %s133 = scalar_lea.vmem %s2, %s132
      %p134 = scmp.lt.s32.totalorder %s13, 1
      %s135 = scalar_select %p134, %s13, 1
      %s136 = smul.addr %s135, 12
      %s137 = smul.addr %s136, 8
      %s138 = scalar_lea.vmem %s0, %s137
      %p139 = scmp.lt.s32.totalorder %s13, 1
      %s140 = scalar_select %p139, %s13, 1
      %s141 = smul.addr %s140, 4
      %s142 = smul.addr %s141, 8
      %s143 = scalar_lea.vmem %s2, %s142
      %v144 = vld [vmem:[%s138] sm:$0xff]
      %v145 = vld [vmem:[%s138 + $0x8] sm:$0xff]
      %v146 = vld [vmem:[%s138 + $0x10] sm:$0xff]
      %v147 = vld [vmem:[%s138 + $0x18] sm:$0xff]
      %v148 = vld [vmem:[%s138 + $0x20] sm:$0xff]
      %v149 = vld [vmem:[%s138 + $0x28] sm:$0xff]
      %v150 = vld [vmem:[%s138 + $0x30] sm:$0xff]
      %v151 = vld [vmem:[%s138 + $0x38] sm:$0xff]
      %v152 = vld [vmem:[%s138 + $0x40] sm:$0xff]
      %v153 = vld [vmem:[%s138 + $0x48] sm:$0xff]
      %v154 = vld [vmem:[%s138 + $0x50] sm:$0xff]
      %v155 = vld [vmem:[%s138 + $0x58] sm:$0xff]
      %v156 = vld [vmem:[%s1] sm:$0xff]
      %v157 = vld [vmem:[%s1 + $0x8] sm:$0xff]
      %v158 = vld [vmem:[%s1 + $0x10] sm:$0xff]
      %v159 = vld [vmem:[%s1 + $0x18] sm:$0xff]
      %vm160 = vcmask 261120
      %v162 = vsel %vm160, %v156, 0
      %v165 = vsel %vm160, %v157, 0
      %v168 = vsel %vm160, %v158, 0
      %v171 = vsel %vm160, %v159, 0
      %173 = vmatpush.msra.mxu0 0.0
      %174 = vmatpush.msra.mxu0 0.0
      %175 = vmatpush.msra.mxu0 0.0
      %176 = vmatpush.msra.mxu0 0.0
      %177 = vmatpush.msra.mxu0 0.0
      %178 = vmatpush.msra.mxu0 0.0
      %179 = vmatpush.msra.mxu0 0.0
      %180 = vmatpush.msra.mxu0 0.0
      %181 = vmatpush.msra.mxu0 0.0
      %182 = vmatpush.msra.mxu0 0.0
      %183 = vmatpush.msra.mxu0 0.0
      %184 = vmatpush.msra.mxu0 0.0
      %185 = vmatpush.msra.mxu0 %v153
      %186 = vmatpush.msra.mxu0 %v150
      %187 = vmatpush.msra.mxu0 %v147
      %188 = vmatpush.msra.mxu0 %v144
      %189 = vmatmul.f32.gmra.mxu0 %v162
      %v190 = vpop.f32.mrf.mxu0
      %v191 = vadd.f32 0.0, %v190
      %192 = vmatmul.f32.gmra.mxu0 %v165
      %v193 = vpop.f32.mrf.mxu0
      %v194 = vadd.f32 0.0, %v193
      %195 = vmatmul.f32.gmra.mxu0 %v168
      %v196 = vpop.f32.mrf.mxu0
      %v197 = vadd.f32 0.0, %v196
      %198 = vmatmul.f32.gmra.mxu0 %v171
      %v199 = vpop.f32.mrf.mxu0
      %v200 = vadd.f32 0.0, %v199
      %201 = vdwg.mxu0
      %202 = vmatpush.msra.mxu0 0.0
      %203 = vmatpush.msra.mxu0 0.0
      %204 = vmatpush.msra.mxu0 0.0
      %205 = vmatpush.msra.mxu0 0.0
      %206 = vmatpush.msra.mxu0 0.0
      %207 = vmatpush.msra.mxu0 0.0
      %208 = vmatpush.msra.mxu0 0.0
      %209 = vmatpush.msra.mxu0 0.0
      %210 = vmatpush.msra.mxu0 0.0
      %211 = vmatpush.msra.mxu0 0.0
      %212 = vmatpush.msra.mxu0 0.0
      %213 = vmatpush.msra.mxu0 0.0
      %214 = vmatpush.msra.mxu0 %v154
      %215 = vmatpush.msra.mxu0 %v151
      %216 = vmatpush.msra.mxu0 %v148
      %217 = vmatpush.msra.mxu0 %v145
      %218 = vmatmul.f32.gmra.mxu0 %v162
      %v219 = vpop.f32.mrf.mxu0
      %v220 = vadd.f32 0.0, %v219
      %221 = vmatmul.f32.gmra.mxu0 %v165
      %v222 = vpop.f32.mrf.mxu0
      %v223 = vadd.f32 0.0, %v222
      %224 = vmatmul.f32.gmra.mxu0 %v168
      %v225 = vpop.f32.mrf.mxu0
      %v226 = vadd.f32 0.0, %v225
      %227 = vmatmul.f32.gmra.mxu0 %v171
      %v228 = vpop.f32.mrf.mxu0
      %v229 = vadd.f32 0.0, %v228
      %230 = vdwg.mxu0
      %231 = vmatpush.msra.mxu0 0.0
      %232 = vmatpush.msra.mxu0 0.0
      %233 = vmatpush.msra.mxu0 0.0
      %234 = vmatpush.msra.mxu0 0.0
      %235 = vmatpush.msra.mxu0 0.0
      %236 = vmatpush.msra.mxu0 0.0
      %237 = vmatpush.msra.mxu0 0.0
      %238 = vmatpush.msra.mxu0 0.0
      %239 = vmatpush.msra.mxu0 0.0
      %240 = vmatpush.msra.mxu0 0.0
      %241 = vmatpush.msra.mxu0 0.0
      %242 = vmatpush.msra.mxu0 0.0
      %243 = vmatpush.msra.mxu0 %v155
      %244 = vmatpush.msra.mxu0 %v152
      %245 = vmatpush.msra.mxu0 %v149
      %246 = vmatpush.msra.mxu0 %v146
      %247 = vmatmul.f32.gmra.mxu0 %v162
      %v248 = vpop.f32.mrf.mxu0
      %v249 = vadd.f32 0.0, %v248
      %250 = vmatmul.f32.gmra.mxu0 %v165
      %v251 = vpop.f32.mrf.mxu0
      %v252 = vadd.f32 0.0, %v251
      %253 = vmatmul.f32.gmra.mxu0 %v168
      %v254 = vpop.f32.mrf.mxu0
      %v255 = vadd.f32 0.0, %v254
      %256 = vmatmul.f32.gmra.mxu0 %v171
      %v257 = vpop.f32.mrf.mxu0
      %v258 = vadd.f32 0.0, %v257
      %259 = vdwg.mxu0
      %v260 = vmul.f32 %v144, %v191
      %v261 = vmul.f32 %v147, %v194
      %v262 = vmul.f32 %v150, %v197
      %v263 = vmul.f32 %v153, %v200
      %v264 = vmul.f32 %v145, %v220
      %v265 = vmul.f32 %v148, %v223
      %v266 = vmul.f32 %v151, %v226
      %v267 = vmul.f32 %v154, %v229
      %v268 = vadd.f32 %v260, %v264
      %v269 = vadd.f32 %v261, %v265
      %v270 = vadd.f32 %v262, %v266
      %v271 = vadd.f32 %v263, %v267
      %v272 = vmul.f32 %v146, %v249
      %v273 = vmul.f32 %v149, %v252
      %v274 = vmul.f32 %v152, %v255
      %v275 = vmul.f32 %v155, %v258
      %v276 = vadd.f32 %v268, %v272
      %v277 = vadd.f32 %v269, %v273
      %v278 = vadd.f32 %v270, %v274
      %v279 = vadd.f32 %v271, %v275
      %v280 = vlaneseq
      %v281 = vand.u32 %v280, 127
      %vm282 = vcmp.lt.s32.totalorder %v281, 16
      %v283 = vsel %vm282, %v276, -inf
      %v284 = vsel %vm282, %v277, -inf
      %v285 = vsel %vm282, %v278, -inf
      %v286 = vsel %vm282, %v279, -inf
      %287 = vmax.xlane.f32.xlu0 %v283
      %v288 = vpop.xlane.xlu0 %287
      %289 = vmax.xlane.f32.xlu0 %v284
      %v290 = vpop.xlane.xlu0 %289
      %291 = vmax.xlane.f32.xlu0 %v285
      %v292 = vpop.xlane.xlu0 %291
      %293 = vmax.xlane.f32.xlu0 %v286
      %v294 = vpop.xlane.xlu0 %293
      %vm295 = vcmp.eq.f32.partialorder %v283, %v288
      %vm296 = vcmp.eq.f32.partialorder %v284, %v290
      %vm297 = vcmp.eq.f32.partialorder %v285, %v292
      %vm298 = vcmp.eq.f32.partialorder %v286, %v294
      %v299 = vsel %vm295, %v281, 128
      %v300 = vsel %vm296, %v281, 128
      %v301 = vsel %vm297, %v281, 128
      %v302 = vsel %vm298, %v281, 128
      %v303 = vand.u32 %v299, 65535
      %v304 = vshra.s32 %v299, 16
      %v305 = vcvt.s32.f32 %v303
      %v306 = vcvt.s32.f32 %v304
      %307 = vmin.xlane.f32.xlu0 %v306
      %v308 = vpop.xlane.xlu0 %307
      %vm309 = vcmp.eq.f32.partialorder %v306, %v308
      %v310 = vsel %vm309, %v305, inf
      %311 = vmin.xlane.f32.xlu0 %v310
      %v312 = vpop.xlane.xlu0 %311
      %v313 = vcvt.f32.s32 %v312
      %v314 = vcvt.f32.s32 %v308
      %v315 = vshll.u32 %v314, 16
      %v316 = vadd.s32 %v315, %v313
      %v317 = vand.u32 %v300, 65535
      %v318 = vshra.s32 %v300, 16
      %v319 = vcvt.s32.f32 %v317
      %v320 = vcvt.s32.f32 %v318
      %321 = vmin.xlane.f32.xlu0 %v320
      %v322 = vpop.xlane.xlu0 %321
      %vm323 = vcmp.eq.f32.partialorder %v320, %v322
      %v324 = vsel %vm323, %v319, inf
      %325 = vmin.xlane.f32.xlu0 %v324
      %v326 = vpop.xlane.xlu0 %325
      %v327 = vcvt.f32.s32 %v326
      %v328 = vcvt.f32.s32 %v322
      %v329 = vshll.u32 %v328, 16
      %v330 = vadd.s32 %v329, %v327
      %v331 = vand.u32 %v301, 65535
      %v332 = vshra.s32 %v301, 16
      %v333 = vcvt.s32.f32 %v331
      %v334 = vcvt.s32.f32 %v332
      %335 = vmin.xlane.f32.xlu0 %v334
      %v336 = vpop.xlane.xlu0 %335
      %vm337 = vcmp.eq.f32.partialorder %v334, %v336
      %v338 = vsel %vm337, %v333, inf
      %339 = vmin.xlane.f32.xlu0 %v338
      %v340 = vpop.xlane.xlu0 %339
      %v341 = vcvt.f32.s32 %v340
      %v342 = vcvt.f32.s32 %v336
      %v343 = vshll.u32 %v342, 16
      %v344 = vadd.s32 %v343, %v341
      %v345 = vand.u32 %v302, 65535
      %v346 = vshra.s32 %v302, 16
      %v347 = vcvt.s32.f32 %v345
      %v348 = vcvt.s32.f32 %v346
      %349 = vmin.xlane.f32.xlu0 %v348
      %v350 = vpop.xlane.xlu0 %349
      %vm351 = vcmp.eq.f32.partialorder %v348, %v350
      %v352 = vsel %vm351, %v347, inf
      %353 = vmin.xlane.f32.xlu0 %v352
      %v354 = vpop.xlane.xlu0 %353
      %v355 = vcvt.f32.s32 %v354
      %v356 = vcvt.f32.s32 %v350
      %v357 = vshll.u32 %v356, 16
      %v358 = vadd.s32 %v357, %v355
      %vm359 = vcmp.eq.s32.totalorder %v281, %v316
      %vm360 = vcmp.eq.s32.totalorder %v281, %v330
      %vm361 = vcmp.eq.s32.totalorder %v281, %v344
      %vm362 = vcmp.eq.s32.totalorder %v281, %v358
      %v363 = vsel %vm359, %v144, 0.0
      %v364 = vsel %vm360, %v147, 0.0
      %v365 = vsel %vm361, %v150, 0.0
      %v366 = vsel %vm362, %v153, 0.0
      %367 = vadd.xlane.f32.xlu0 %v363
      %v368 = vpop.xlane.xlu0 %367
      %369 = vadd.xlane.f32.xlu0 %v364
      %v370 = vpop.xlane.xlu0 %369
      %371 = vadd.xlane.f32.xlu0 %v365
      %v372 = vpop.xlane.xlu0 %371
      %373 = vadd.xlane.f32.xlu0 %v366
      %v374 = vpop.xlane.xlu0 %373
      %v375 = vsel %vm359, %v145, 0.0
      %v376 = vsel %vm360, %v148, 0.0
      %v377 = vsel %vm361, %v151, 0.0
      %v378 = vsel %vm362, %v154, 0.0
      %379 = vadd.xlane.f32.xlu0 %v375
      %v380 = vpop.xlane.xlu0 %379
      %381 = vadd.xlane.f32.xlu0 %v376
      %v382 = vpop.xlane.xlu0 %381
      %383 = vadd.xlane.f32.xlu0 %v377
      %v384 = vpop.xlane.xlu0 %383
      %385 = vadd.xlane.f32.xlu0 %v378
      %v386 = vpop.xlane.xlu0 %385
      %v387 = vsel %vm359, %v146, 0.0
      %v388 = vsel %vm360, %v149, 0.0
      %v389 = vsel %vm361, %v152, 0.0
      %v390 = vsel %vm362, %v155, 0.0
      %391 = vadd.xlane.f32.xlu0 %v387
      %v392 = vpop.xlane.xlu0 %391
      %393 = vadd.xlane.f32.xlu0 %v388
      %v394 = vpop.xlane.xlu0 %393
      %395 = vadd.xlane.f32.xlu0 %v389
      %v396 = vpop.xlane.xlu0 %395
      %397 = vadd.xlane.f32.xlu0 %v390
      %v398 = vpop.xlane.xlu0 %397
      %vm399 = vcmp.eq.s32.totalorder %v281, 0
      %vm400 = vcmp.eq.s32.totalorder %v281, 1
      %v401 = vsel %vm400, %v380, %v392
      %v402 = vsel %vm400, %v382, %v394
      %v403 = vsel %vm400, %v384, %v396
      %v404 = vsel %vm400, %v386, %v398
      %v405 = vsel %vm399, %v368, %v401
      %v406 = vsel %vm399, %v370, %v402
      %v407 = vsel %vm399, %v372, %v403
      %v408 = vsel %vm399, %v374, %v404
      %vm409 = vcmask 23552
      %410 = vst.msk [vmem:[%s143] sm:$0xff] %vm409, %v405
      %411 = vst.msk [vmem:[%s143 + $0x8] sm:$0xff] %vm409, %v406
      %412 = vst.msk [vmem:[%s143 + $0x10] sm:$0xff] %vm409, %v407
      %413 = vst.msk [vmem:[%s143 + $0x18] sm:$0xff] %vm409, %v408
      %p414 = scmp.lt.s32.totalorder %s13, 1
      %s415 = scalar_select %p414, %s13, 1
      %s416 = smul.addr %s415, 4
      %s417 = smul.addr %s416, 8
      %s418 = scalar_lea.vmem %s2, %s417
      // Predicated region
      $region29: #{vn_max_pool.1} parent=27 // pred_check
        %p419 = pneg %p78
      $region30: #{vn_max_pool.1} parent=27 // pred_check_branch
        %421 = sbr.rel (%p419) target = $region32
      $region31: #{vn_max_pool.1} parent=27 // pred_region
        _
      $region32: #{vn_max_pool.1} parent=27 // pred_fallthru
        _
    $region28: #{vn_max_pool.1} parent=5 // pred_fallthru
      _
    %p422 = scmp.le.s32.totalorder 2, %s8
    // Predicated region
    $region33: #{vn_max_pool.1} parent=5 // pred_check
      %p423 = pneg %p422
    $region34: #{vn_max_pool.1} parent=5 // pred_check_branch
      %425 = sbr.rel (%p423) target = $region36
    $region35: #{vn_max_pool.1} parent=5 // pred_region
      %s426 = ssub.s32 %s8, 2
      // Predicated region
      $region37: #{vn_max_pool.1} parent=35 // pred_check
        %p427 = pneg %p84
      $region38: #{vn_max_pool.1} parent=35 // pred_check_branch
        %429 = sbr.rel (%p427) target = $region40
      $region39: #{vn_max_pool.1} parent=35 // pred_region
        %p430 = scmp.lt.s32.totalorder %s14, 1
        %s431 = scalar_select %p430, %s14, 1
        %s432 = smul.addr %s431, 4
        %s433 = smul.addr %s432, 8
        %s434 = scalar_lea.vmem %s2, %s433
      $region40: #{vn_max_pool.1} parent=35 // pred_fallthru
        _
    $region36: #{vn_max_pool.1} parent=5 // pred_fallthru
      _
  $region6: #{vn_max_pool.1} parent=0 // loop_footer
    %s12 = sadd.s32 1, %s8
  $region7: #{vn_max_pool.1} parent=0 // loop_footer_branch
    %7 = sbr.rel target = $region3
  $region8: #{vn_max_pool.1} parent=0 // loop_exit
    _

</llo_original>
